<compile_context>
chip_gen: v6e
topology: v6e:2x2x1
jax: 0.10.0
libtpu: 0.0.40
codegen_flags: <defaults>
</compile_context>

<pallas_src>
import functools

import jax
import jax.numpy as jnp
from jax.experimental import pallas as pl
from jax.experimental.pallas import tpu as pltpu


def _round_up(x, m):
    return (x + m - 1) // m * m


def _cnn_highway_kernel(filters, num_highway, seq_len, n_pos, out_dim,
                        x_ref, conv_w_ref, conv_b_ref, hw_w_ref, hw_b_ref,
                        out_ref):
    """One batch tile of the fused CnnHighway forward.

    x_ref      : (B_TILE, L_PAD, D)                 f32  (zero-padded along L)
    conv_w_ref : (MAX_W, D, out_dim)                bf16 (all filters packed; missing taps = 0)
    conv_b_ref : (1, out_dim)                       f32  (all conv biases concatenated)
    hw_w_ref   : (num_highway, out_dim, 2*out_dim)  bf16 (pre-transposed vs torch Linear)
    hw_b_ref   : (num_highway, 1, 2*out_dim)        f32
    out_ref    : (B_TILE, out_dim)                  f32
    """
    b_tile = x_ref.shape[0]
    max_width = conv_w_ref.shape[0]
    d = x_ref.shape[2]

    # --- fused conv: per-tap accumulation, batch*positions folded into MXU M. ---
    acc = jnp.zeros((b_tile * n_pos, out_dim), jnp.float32)
    for k in range(max_width):
        xk = x_ref[:, k:k + n_pos, :].reshape(b_tile * n_pos, d)
        acc = acc + jnp.dot(xk.astype(jnp.bfloat16), conv_w_ref[k],
                            preferred_element_type=jnp.float32)
    conv = acc.reshape(b_tile, n_pos, out_dim)

    # --- mask invalid window positions per filter group, then global max pool. ---
    # channel c belongs to filter f  =>  valid positions are [0, L - width_f + 1)
    pos = jax.lax.broadcasted_iota(jnp.int32, (n_pos, out_dim), 0)
    lane = jax.lax.broadcasted_iota(jnp.int32, (n_pos, out_dim), 1)
    valid_len = jnp.zeros((n_pos, out_dim), jnp.int32)
    off = 0
    for width, num in filters:
        sel = (lane >= off) & (lane < off + num)
        valid_len = jnp.where(sel, seq_len - width + 1, valid_len)
        off += num
    mask = pos < valid_len                                  # (n_pos, out_dim)
    conv = jnp.where(mask[None, :, :], conv, -jnp.inf)
    pooled = jnp.max(conv, axis=1)                          # (B_TILE, out_dim)

    # conv bias + ReLU AFTER the pool (bias constant along pooled axis; relu monotone)
    h = jnp.maximum(pooled + conv_b_ref[...], 0.0)

    # --- highway: o, g = chunk(h @ W + b, 2); h = g*h + (1-g)*relu(o) ---
    for li in range(num_highway):
        og = jnp.dot(h.astype(jnp.bfloat16), hw_w_ref[li],
                     preferred_element_type=jnp.float32) + hw_b_ref[li]
        o = jnp.maximum(og[:, :out_dim], 0.0)               # lane-aligned chunk
        g = jax.nn.sigmoid(og[:, out_dim:])                 # EUP
        h = g * h + (1.0 - g) * o

    out_ref[...] = h.astype(out_ref.dtype)


def cnn_highway(x, conv_w_packed, conv_b, hw_w, hw_b, filters,
                num_highway=1, b_tile=8):
    """x: (B, L, D) f32 (module input BEFORE its internal transpose(1, 2))."""
    B, L, D = x.shape
    out_dim = sum(n for _, n in filters)
    max_width = max(w for w, _ in filters)
    min_width = min(w for w, _ in filters)

    # 8-sublane aligned pooled axis and padded seq length -> tile-aligned reshapes.
    n_pos = _round_up(L - min_width + 1, 8)
    l_pad = _round_up(n_pos + max_width - 1, 8)
    x_pad = jnp.pad(x, ((0, 0), (0, l_pad - L), (0, 0)))

    b_tile = min(b_tile, B)
    assert B % b_tile == 0, "batch must be divisible by the batch tile"
    grid = (B // b_tile,)

    kernel = functools.partial(_cnn_highway_kernel, tuple(filters), num_highway,
                               L, n_pos, out_dim)
    return pl.pallas_call(
        kernel,
        out_shape=jax.ShapeDtypeStruct((B, out_dim), jnp.float32),
        grid=grid,
        in_specs=[
            # batch tile of x: streamed / double-buffered per grid step
            pl.BlockSpec((b_tile, l_pad, D), lambda b: (b, 0, 0)),
            # weights & biases: block 0 for every grid step -> stay resident in VMEM
            pl.BlockSpec((max_width, D, out_dim), lambda b: (0, 0, 0)),
            pl.BlockSpec((1, out_dim), lambda b: (0, 0)),
            pl.BlockSpec((num_highway, out_dim, 2 * out_dim), lambda b: (0, 0, 0)),
            pl.BlockSpec((num_highway, 1, 2 * out_dim), lambda b: (0, 0, 0)),
        ],
        out_specs=pl.BlockSpec((b_tile, out_dim), lambda b: (b, 0)),
        compiler_params=pltpu.CompilerParams(
            dimension_semantics=("parallel",),   # shards grid over 2 TCs on v7x
            vmem_limit_bytes=32 * 1024 * 1024,   # explicit; size b_tile against this
        ),
    )(x_pad, conv_w_packed, conv_b, hw_w, hw_b)


def _reference(x, conv_w_list, conv_b, hw_w, hw_b, filters):
    """Pure-JAX reference mirroring the kernel math (bf16 MXU inputs, f32 accum)."""
    B, L, D = x.shape
    feats = []
    off = 0
    for (width, num), w in zip(filters, conv_w_list):
        l_out = L - width + 1
        acc = jnp.zeros((B * l_out, num), jnp.float32)
        for k in range(width):
            xs = x[:, k:k + l_out, :].reshape(B * l_out, D)
            acc = acc + jnp.dot(xs.astype(jnp.bfloat16),
                                w[k].astype(jnp.bfloat16),
                                preferred_element_type=jnp.float32)
        pooled = jnp.max(acc.reshape(B, l_out, num), axis=1) + conv_b[0, off:off + num]
        feats.append(jnp.maximum(pooled, 0.0))
        off += num
    h = jnp.concatenate(feats, axis=-1)
    od = h.shape[-1]
    for li in range(hw_w.shape[0]):
        og = jnp.dot(h.astype(jnp.bfloat16), hw_w[li].astype(jnp.bfloat16),
                     preferred_element_type=jnp.float32) + hw_b[li, 0]
        o = jnp.maximum(og[:, :od], 0.0)
        g = jax.nn.sigmoid(og[:, od:])
        h = g * h + (1.0 - g) * o
    return h


if __name__ == "__main__":
    # Small, TPU-friendly shapes consistent with the module.
    B, L, D = 16, 16, 32                    # batch, seq_len, input_dim
    filters = ((2, 64), (3, 64))            # (kernel width, num filters)
    num_highway = 1
    out_dim = sum(n for _, n in filters)    # 128
    max_width = max(w for w, _ in filters)

    key = jax.random.PRNGKey(0)
    k_x, k_cw, k_cb, k_hw = jax.random.split(key, 4)

    x = jax.random.normal(k_x, (B, L, D), dtype=jnp.float32)

    # Per-filter Conv1d weights generated directly in (tap, D, num) layout
    # (torch layout is (num, D, tap): w[k, d, n] == torch_weight[n, d, k]).
    conv_w_list, conv_b_list = [], []
    kws = jax.random.split(k_cw, len(filters))
    kbs = jax.random.split(k_cb, len(filters))
    for (width, num), kw, kb in zip(filters, kws, kbs):
        fan_in = width * D
        conv_w_list.append(jax.random.normal(kw, (width, D, num), jnp.float32)
                           * jnp.sqrt(2.0 / fan_in))
        conv_b_list.append(0.1 * jax.random.normal(kb, (num,), jnp.float32))

    # Pack all filters into one (max_width, D, out_dim) weight (missing taps = 0)
    # and one (1, out_dim) bias row -> lane-dense fused conv, fewer input DMAs.
    conv_w_packed = jnp.zeros((max_width, D, out_dim), jnp.float32)
    off = 0
    for (width, num), w in zip(filters, conv_w_list):
        conv_w_packed = conv_w_packed.at[:width, :, off:off + num].set(w)
        off += num
    conv_b = jnp.concatenate(conv_b_list)[None, :]          # (1, out_dim)

    # Highway weights pre-transposed to (out_dim, 2*out_dim); torch init:
    # zeros for the transform-bias half (o), ones for the gate-bias half (g).
    hw_w = (jax.random.normal(k_hw, (num_highway, out_dim, 2 * out_dim), jnp.float32)
            * jnp.sqrt(2.0 / out_dim))
    hw_b = jnp.concatenate([jnp.zeros((num_highway, 1, out_dim), jnp.float32),
                            jnp.ones((num_highway, 1, out_dim), jnp.float32)],
                           axis=-1)

    out = cnn_highway(x, conv_w_packed.astype(jnp.bfloat16), conv_b,
                      hw_w.astype(jnp.bfloat16), hw_b, filters,
                      num_highway=num_highway, b_tile=8)
    out = jax.block_until_ready(out)

    ref = _reference(x, conv_w_list, conv_b, hw_w, hw_b, filters)

    assert out.shape == (B, out_dim)
    assert bool(jnp.all(jnp.isfinite(out)))
    err = jnp.max(jnp.abs(out - ref))
    assert jnp.allclose(out, ref, rtol=1e-2, atol=1e-2), f"max abs err {err}"

    print("KERNEL_OK")
</pallas_src>

<mosaic_0001>
module attributes {stable_mosaic.version = 11 : i64} {
  func.func @_cnn_highway_kernel(%arg0: i32, %arg1: memref<8x24x32xf32, #tpu.memory_space<vmem>>, %arg2: memref<3x32x128xbf16, #tpu.memory_space<vmem>>, %arg3: memref<1x128xf32, #tpu.memory_space<vmem>>, %arg4: memref<1x128x256xbf16, #tpu.memory_space<vmem>>, %arg5: memref<1x1x256xf32, #tpu.memory_space<vmem>>, %arg6: memref<8x128xf32, #tpu.memory_space<vmem>>) attributes {dimension_semantics = [#tpu.dimension_semantics<parallel>], iteration_bounds = array<i64: 2>, scalar_prefetch = 0 : i64, scratch_operands = 0 : i64, tpu.core_type = #tpu.core_type<tc>, window_params = [{transform_indices = @transform_0, window_bounds = array<i64: 8, 24, 32>}, {pipeline_mode = #tpu.pipeline_mode<synchronous>, transform_indices = @transform_1, window_bounds = array<i64: 3, 32, 128>}, {pipeline_mode = #tpu.pipeline_mode<synchronous>, transform_indices = @transform_2, window_bounds = array<i64: 1, 128>}, {pipeline_mode = #tpu.pipeline_mode<synchronous>, transform_indices = @transform_3, window_bounds = array<i64: 1, 128, 256>}, {pipeline_mode = #tpu.pipeline_mode<synchronous>, transform_indices = @transform_4, window_bounds = array<i64: 1, 1, 256>}, {transform_indices = @transform_5, window_bounds = array<i64: 8, 128>}]} {
    %cst = arith.constant 0.000000e+00 : f32
    %0 = vector.broadcast %cst : f32 to vector<128x128xf32>
    %c0 = arith.constant 0 : index
    %c0_0 = arith.constant 0 : index
    %c0_1 = arith.constant 0 : index
    %1 = vector.load %arg1[%c0, %c0_0, %c0_1] : memref<8x24x32xf32, #tpu.memory_space<vmem>>, vector<8x16x32xf32>
    %2 = vector.shape_cast %1 : vector<8x16x32xf32> to vector<128x32xf32>
    %3 = arith.truncf %2 : vector<128x32xf32> to vector<128x32xbf16>
    %c0_2 = arith.constant 0 : index
    %c0_3 = arith.constant 0 : index
    %c0_4 = arith.constant 0 : index
    %4 = vector.load %arg2[%c0_2, %c0_3, %c0_4] : memref<3x32x128xbf16, #tpu.memory_space<vmem>>, vector<1x32x128xbf16>
    %5 = vector.shape_cast %4 : vector<1x32x128xbf16> to vector<32x128xbf16>
    %cst_5 = arith.constant dense<0.000000e+00> : vector<128x128xf32>
    %6 = tpu.matmul %3, %5, %cst_5 {dimension_numbers = #tpu.dot_dimension_numbers<[1], [0], [0], [1], [0, 0, 1, 1], [], []>} : vector<128x32xbf16>, vector<32x128xbf16>, vector<128x128xf32> -> vector<128x128xf32>
    %7 = arith.addf %0, %6 : vector<128x128xf32>
    %c0_6 = arith.constant 0 : index
    %c1 = arith.constant 1 : index
    %c0_7 = arith.constant 0 : index
    %8 = vector.load %arg1[%c0_6, %c1, %c0_7] : memref<8x24x32xf32, #tpu.memory_space<vmem>>, vector<8x16x32xf32>
    %9 = vector.shape_cast %8 : vector<8x16x32xf32> to vector<128x32xf32>
    %10 = arith.truncf %9 : vector<128x32xf32> to vector<128x32xbf16>
    %c1_8 = arith.constant 1 : index
    %c0_9 = arith.constant 0 : index
    %c0_10 = arith.constant 0 : index
    %11 = vector.load %arg2[%c1_8, %c0_9, %c0_10] : memref<3x32x128xbf16, #tpu.memory_space<vmem>>, vector<1x32x128xbf16>
    %12 = vector.shape_cast %11 : vector<1x32x128xbf16> to vector<32x128xbf16>
    %cst_11 = arith.constant dense<0.000000e+00> : vector<128x128xf32>
    %13 = tpu.matmul %10, %12, %cst_11 {dimension_numbers = #tpu.dot_dimension_numbers<[1], [0], [0], [1], [0, 0, 1, 1], [], []>} : vector<128x32xbf16>, vector<32x128xbf16>, vector<128x128xf32> -> vector<128x128xf32>
    %14 = arith.addf %7, %13 : vector<128x128xf32>
    %c0_12 = arith.constant 0 : index
    %c2 = arith.constant 2 : index
    %c0_13 = arith.constant 0 : index
    %15 = vector.load %arg1[%c0_12, %c2, %c0_13] : memref<8x24x32xf32, #tpu.memory_space<vmem>>, vector<8x16x32xf32>
    %16 = vector.shape_cast %15 : vector<8x16x32xf32> to vector<128x32xf32>
    %17 = arith.truncf %16 : vector<128x32xf32> to vector<128x32xbf16>
    %c2_14 = arith.constant 2 : index
    %c0_15 = arith.constant 0 : index
    %c0_16 = arith.constant 0 : index
    %18 = vector.load %arg2[%c2_14, %c0_15, %c0_16] : memref<3x32x128xbf16, #tpu.memory_space<vmem>>, vector<1x32x128xbf16>
    %19 = vector.shape_cast %18 : vector<1x32x128xbf16> to vector<32x128xbf16>
    %cst_17 = arith.constant dense<0.000000e+00> : vector<128x128xf32>
    %20 = tpu.matmul %17, %19, %cst_17 {dimension_numbers = #tpu.dot_dimension_numbers<[1], [0], [0], [1], [0, 0, 1, 1], [], []>} : vector<128x32xbf16>, vector<32x128xbf16>, vector<128x128xf32> -> vector<128x128xf32>
    %21 = arith.addf %14, %20 : vector<128x128xf32>
    %22 = vector.shape_cast %21 : vector<128x128xf32> to vector<8x16x128xf32>
    %23 = tpu.iota {dimensions = array<i32: 0>} : vector<16x128xi32>
    %24 = tpu.iota {dimensions = array<i32: 1>} : vector<16x128xi32>
    %c0_i32 = arith.constant 0 : i32
    %25 = vector.broadcast %c0_i32 : i32 to vector<16x128xi32>
    %c0_i32_18 = arith.constant 0 : i32
    %26 = vector.broadcast %c0_i32_18 : i32 to vector<16x128xi32>
    %27 = arith.cmpi sge, %24, %26 : vector<16x128xi32>
    %c64_i32 = arith.constant 64 : i32
    %28 = vector.broadcast %c64_i32 : i32 to vector<16x128xi32>
    %29 = arith.cmpi slt, %24, %28 : vector<16x128xi32>
    %30 = arith.andi %27, %29 : vector<16x128xi1>
    %c15_i32 = arith.constant 15 : i32
    %31 = vector.broadcast %c15_i32 : i32 to vector<16x128xi32>
    %32 = arith.select %30, %31, %25 : vector<16x128xi1>, vector<16x128xi32>
    %c64_i32_19 = arith.constant 64 : i32
    %33 = vector.broadcast %c64_i32_19 : i32 to vector<16x128xi32>
    %34 = arith.cmpi sge, %24, %33 : vector<16x128xi32>
    %c128_i32 = arith.constant 128 : i32
    %35 = vector.broadcast %c128_i32 : i32 to vector<16x128xi32>
    %36 = arith.cmpi slt, %24, %35 : vector<16x128xi32>
    %37 = arith.andi %34, %36 : vector<16x128xi1>
    %c14_i32 = arith.constant 14 : i32
    %38 = vector.broadcast %c14_i32 : i32 to vector<16x128xi32>
    %39 = arith.select %37, %38, %32 : vector<16x128xi1>, vector<16x128xi32>
    %40 = arith.cmpi slt, %23, %39 : vector<16x128xi32>
    %41 = vector.shape_cast %40 : vector<16x128xi1> to vector<1x16x128xi1>
    %cst_20 = arith.constant 0xFF800000 : f32
    %42 = vector.shape_cast %41 : vector<1x16x128xi1> to vector<1x16x128xi1>
    %43 = vector.broadcast %42 : vector<1x16x128xi1> to vector<8x16x128xi1>
    %44 = vector.broadcast %cst_20 : f32 to vector<8x16x128xf32>
    %45 = arith.select %43, %22, %44 : vector<8x16x128xi1>, vector<8x16x128xf32>
    %cst_21 = arith.constant dense<0xFF800000> : vector<8x128xf32>
    %46 = vector.multi_reduction <maximumf>, %45, %cst_21 [1] : vector<8x16x128xf32> to vector<8x128xf32>
    %c0_22 = arith.constant 0 : index
    %c0_23 = arith.constant 0 : index
    %47 = vector.load %arg3[%c0_22, %c0_23] : memref<1x128xf32, #tpu.memory_space<vmem>>, vector<1x128xf32>
    %48 = vector.broadcast %47 : vector<1x128xf32> to vector<8x128xf32>
    %49 = arith.addf %46, %48 : vector<8x128xf32>
    %cst_24 = arith.constant 0.000000e+00 : f32
    %50 = vector.broadcast %cst_24 : f32 to vector<8x128xf32>
    %51 = arith.maximumf %49, %50 : vector<8x128xf32>
    %52 = arith.truncf %51 : vector<8x128xf32> to vector<8x128xbf16>
    %c0_25 = arith.constant 0 : index
    %c0_26 = arith.constant 0 : index
    %c0_27 = arith.constant 0 : index
    %53 = vector.load %arg4[%c0_25, %c0_26, %c0_27] : memref<1x128x256xbf16, #tpu.memory_space<vmem>>, vector<1x128x256xbf16>
    %54 = vector.shape_cast %53 : vector<1x128x256xbf16> to vector<128x256xbf16>
    %cst_28 = arith.constant dense<0.000000e+00> : vector<8x256xf32>
    %55 = tpu.matmul %52, %54, %cst_28 {dimension_numbers = #tpu.dot_dimension_numbers<[1], [0], [0], [1], [0, 0, 1, 1], [], []>} : vector<8x128xbf16>, vector<128x256xbf16>, vector<8x256xf32> -> vector<8x256xf32>
    %c0_29 = arith.constant 0 : index
    %c0_30 = arith.constant 0 : index
    %c0_31 = arith.constant 0 : index
    %56 = vector.load %arg5[%c0_29, %c0_30, %c0_31] : memref<1x1x256xf32, #tpu.memory_space<vmem>>, vector<1x1x256xf32>
    %57 = vector.shape_cast %56 : vector<1x1x256xf32> to vector<1x256xf32>
    %58 = vector.broadcast %57 : vector<1x256xf32> to vector<8x256xf32>
    %59 = arith.addf %55, %58 : vector<8x256xf32>
    %60 = vector.extract_strided_slice %59 {offsets = [0, 0], sizes = [8, 128], strides = [1, 1]} : vector<8x256xf32> to vector<8x128xf32>
    %cst_32 = arith.constant 0.000000e+00 : f32
    %61 = vector.broadcast %cst_32 : f32 to vector<8x128xf32>
    %62 = arith.maximumf %60, %61 : vector<8x128xf32>
    %63 = vector.extract_strided_slice %59 {offsets = [0, 128], sizes = [8, 128], strides = [1, 1]} : vector<8x256xf32> to vector<8x128xf32>
    %64 = arith.negf %63 : vector<8x128xf32>
    %65 = math.exp %64 : vector<8x128xf32>
    %cst_33 = arith.constant 1.000000e+00 : f32
    %66 = vector.broadcast %cst_33 : f32 to vector<8x128xf32>
    %67 = arith.addf %66, %65 : vector<8x128xf32>
    %68 = arith.divf %66, %67 : vector<8x128xf32>
    %69 = arith.mulf %68, %51 : vector<8x128xf32>
    %cst_34 = arith.constant 1.000000e+00 : f32
    %70 = vector.broadcast %cst_34 : f32 to vector<8x128xf32>
    %71 = arith.subf %70, %68 : vector<8x128xf32>
    %72 = arith.mulf %71, %62 : vector<8x128xf32>
    %73 = arith.addf %69, %72 : vector<8x128xf32>
    %c0_35 = arith.constant 0 : index
    %c0_36 = arith.constant 0 : index
    %74 = vector.load %arg6[%c0_35, %c0_36] : memref<8x128xf32, #tpu.memory_space<vmem>>, vector<8x128xf32>
    tpu.vector_store %arg6[%c0_35, %c0_36], %73 {strides = array<i32>} : memref<8x128xf32, #tpu.memory_space<vmem>>, vector<8x128xf32>,
    return
  }
  func.func @transform_0(%arg0: i32) -> (i32, i32, i32) {
    %c0_i32 = arith.constant 0 : i32
    %c0_i32_0 = arith.constant 0 : i32
    %c0_i32_1 = arith.constant 0 : i32
    return %arg0, %c0_i32, %c0_i32_0 : i32, i32, i32
  }
  func.func @transform_1(%arg0: i32) -> (i32, i32, i32) {
    %c0_i32 = arith.constant 0 : i32
    %c0_i32_0 = arith.constant 0 : i32
    %c0_i32_1 = arith.constant 0 : i32
    %c0_i32_2 = arith.constant 0 : i32
    return %c0_i32, %c0_i32_0, %c0_i32_1 : i32, i32, i32
  }
  func.func @transform_2(%arg0: i32) -> (i32, i32) {
    %c0_i32 = arith.constant 0 : i32
    %c0_i32_0 = arith.constant 0 : i32
    %c0_i32_1 = arith.constant 0 : i32
    return %c0_i32, %c0_i32_0 : i32, i32
  }
  func.func @transform_3(%arg0: i32) -> (i32, i32, i32) {
    %c0_i32 = arith.constant 0 : i32
    %c0_i32_0 = arith.constant 0 : i32
    %c0_i32_1 = arith.constant 0 : i32
    %c0_i32_2 = arith.constant 0 : i32
    return %c0_i32, %c0_i32_0, %c0_i32_1 : i32, i32, i32
  }
  func.func @transform_4(%arg0: i32) -> (i32, i32, i32) {
    %c0_i32 = arith.constant 0 : i32
    %c0_i32_0 = arith.constant 0 : i32
    %c0_i32_1 = arith.constant 0 : i32
    %c0_i32_2 = arith.constant 0 : i32
    return %c0_i32, %c0_i32_0, %c0_i32_1 : i32, i32, i32
  }
  func.func @transform_5(%arg0: i32) -> (i32, i32) {
    %c0_i32 = arith.constant 0 : i32
    %c0_i32_0 = arith.constant 0 : i32
    return %arg0, %c0_i32 : i32, i32
  }
}

</mosaic_0001>

<llo_original>
// kernel: tpu_custom_call.1
$region0: #{tpu_custom_call.1}
  #allocation0 [shape = 'u32[]', space=smem, size = 0x4, offset = 0x4, fixed_abs, tag = 'smem constant byte address 0x4 - core index']
  #allocation1 [shape = 'u32[144,128]{1,0:T(1,128)}', space=vmem, size = 0x12000, scoped, tag = 'internal scratch']
  %s0 = inlined_call_operand.hbm [shape: f32[16,24,32], index: 0, kind: input, shape index: {}]
  %s1 = inlined_call_operand.hbm [shape: bf16[3,32,128], index: 1, kind: input, shape index: {}]
  %s2 = inlined_call_operand.vmem [shape: f32[1,128], index: 2, kind: input, shape index: {}]
  %s3 = inlined_call_operand.hbm [shape: bf16[1,128,256], index: 3, kind: input, shape index: {}]
  %s4 = inlined_call_operand.vmem [shape: f32[1,1,256], index: 4, kind: input, shape index: {}]
  %s5 = inlined_call_operand.hbm [shape: f32[16,128], index: 5, kind: output, shape index: {}]
  %s6 = sld [smem:[#allocation0]]
  $region65: #{tpu_custom_call.1} parent=0
    _
  %s8 = ssub.s32 1, %s6
  %s9 = scalar_select 0, %s8, %s6
  $region1: #{tpu_custom_call.1} parent=0
    #allocation2 [shape = 'u8[196608]{0}', space=vmem, size = 0x30000, scoped, tag = 'input window, operand 0']
    #allocation3 [shape = 's32[2]{0}', space=sflag, size = 0x8, scoped, tag = 'scoped memory for tpu_custom_call.1']
    #allocation4 [shape = 's32[2]{0}', space=sflag, size = 0x8, scoped, tag = 'scoped memory for tpu_custom_call.1']
    #allocation5 [shape = 'u8[24576]{0}', space=vmem, size = 0x6000, scoped, tag = 'input window, operand 1, single buffered']
    #allocation6 [shape = 's32[1]{0}', space=sflag, size = 0x4, scoped, tag = 'scoped memory for tpu_custom_call.1']
    #allocation7 [shape = 'u8[65536]{0}', space=vmem, size = 0x10000, scoped, tag = 'input window, operand 3, single buffered']
    #allocation8 [shape = 'u8[8192]{0}', space=vmem, size = 0x2000, scoped, tag = 'output window, operand 0']
    %10 = vsyncpa [#allocation3], 0
    %s11 = scalar_lea.sflag [#allocation3], 1
    %12 = vsyncpa %s11, 0
    %13 = vsyncpa [#allocation6], 0
    %14 = vsyncpa [#allocation4], 0
    %s15 = scalar_lea.sflag [#allocation4], 1
    %16 = vsyncpa %s15, 0
    loop: start=0, step=1, limit=4
    $region2: #{tpu_custom_call.1} parent=1 // loop_pre_header
      _
    $region3: #{tpu_custom_call.1} parent=1 // loop_header
      %s18 = sphi 0, %s22
      %p19 = scmp.ge.s32.totalorder %s18, 4
      %s28 = sphi 0, %s30
      %s31 = sphi 0, %s28
      %s32 = sphi 0, %s31
      %s48 = sphi 0, %s32
      %s52 = sphi 0, %s52
      %s54 = sphi 0, %s52
      %s55 = sphi 0, %s54
      %s69 = sphi 0, %s55
      %s73 = sphi 0, %s73
      %s75 = sphi 0, %s73
      %s76 = sphi 0, %s75
      %s90 = sphi 0, %s76
      %s94 = sphi 0, %s94
      %s96 = sphi 0, %s94
      %s97 = sphi 0, %s96
      %s111 = sphi 0, %s97
      %s115 = sphi 0, %s115
      %s117 = sphi 0, %s115
      %s118 = sphi 0, %s117
      %s132 = sphi 0, %s118
      %s138 = sphi 0, %s140
      %s141 = sphi 0, %s138
      %s142 = sphi 0, %s141
      %s158 = sphi 0, %s142
    $region4: #{tpu_custom_call.1} parent=1 // loop_header_branch
      %21 = sbr.rel (%p19) target = $region8
    $region5: #{tpu_custom_call.1} parent=1 // loop_body
      %s23 = ssub.s32 %s18, 1
      %s24 = ssub.s32 %s18, 2
      %s25 = sadd.s32 %s18, 1
      %s26 = ssub.s32 %s18, %s25
      %p27 = scmp.eq.s32.totalorder %s26, 0
      %s29 = sadd.s32 %s28, 1
      %s30 = scalar_select %p27, %s28, %s29
      %p33 = pneg %p27
      %p34 = scmp.eq.s32.totalorder %s18, 1
      %p35 = por %p33, %p34
      %p36 = scmp.ne.s32.totalorder %s28, %s31
      %p37 = scmp.eq.s32.totalorder %s18, 0
      %p38 = por %p36, %p37
      %p39 = scmp.ne.s32.totalorder %s28, %s31
      %p40 = scmp.eq.s32.totalorder %s23, 1
      %p41 = por %p39, %p40
      %p42 = scmp.ne.s32.totalorder %s31, %s32
      %p43 = scmp.eq.s32.totalorder %s23, 0
      %p44 = por %p42, %p43
      %p45 = scmp.ne.s32.totalorder %s31, %s32
      %p46 = scmp.eq.s32.totalorder %s24, 1
      %p47 = por %p45, %p46
      %p49 = scmp.ne.s32.totalorder %s32, %s48
      %p50 = scmp.eq.s32.totalorder %s24, 0
      %p51 = por %p49, %p50
      %s53 = sadd.s32 %s52, 1
      %p56 = scmp.eq.s32.totalorder %s18, 1
      %p57 = scmp.ne.s32.totalorder %s52, %s54
      %p58 = scmp.eq.s32.totalorder %s18, 0
      %p59 = por %p57, %p58
      %p60 = scmp.ne.s32.totalorder %s52, %s54
      %p61 = scmp.eq.s32.totalorder %s23, 1
      %p62 = por %p60, %p61
      %p63 = scmp.ne.s32.totalorder %s54, %s55
      %p64 = scmp.eq.s32.totalorder %s23, 0
      %p65 = por %p63, %p64
      %p66 = scmp.ne.s32.totalorder %s54, %s55
      %p67 = scmp.eq.s32.totalorder %s24, 1
      %p68 = por %p66, %p67
      %p70 = scmp.ne.s32.totalorder %s55, %s69
      %p71 = scmp.eq.s32.totalorder %s24, 0
      %p72 = por %p70, %p71
      %s74 = sadd.s32 %s73, 1
      %p77 = scmp.eq.s32.totalorder %s18, 1
      %p78 = scmp.ne.s32.totalorder %s73, %s75
      %p79 = scmp.eq.s32.totalorder %s18, 0
      %p80 = por %p78, %p79
      %p81 = scmp.ne.s32.totalorder %s73, %s75
      %p82 = scmp.eq.s32.totalorder %s23, 1
      %p83 = por %p81, %p82
      %p84 = scmp.ne.s32.totalorder %s75, %s76
      %p85 = scmp.eq.s32.totalorder %s23, 0
      %p86 = por %p84, %p85
      %p87 = scmp.ne.s32.totalorder %s75, %s76
      %p88 = scmp.eq.s32.totalorder %s24, 1
      %p89 = por %p87, %p88
      %p91 = scmp.ne.s32.totalorder %s76, %s90
      %p92 = scmp.eq.s32.totalorder %s24, 0
      %p93 = por %p91, %p92
      %s95 = sadd.s32 %s94, 1
      %p98 = scmp.eq.s32.totalorder %s18, 1
      %p99 = scmp.ne.s32.totalorder %s94, %s96
      %p100 = scmp.eq.s32.totalorder %s18, 0
      %p101 = por %p99, %p100
      %p102 = scmp.ne.s32.totalorder %s94, %s96
      %p103 = scmp.eq.s32.totalorder %s23, 1
      %p104 = por %p102, %p103
      %p105 = scmp.ne.s32.totalorder %s96, %s97
      %p106 = scmp.eq.s32.totalorder %s23, 0
      %p107 = por %p105, %p106
      %p108 = scmp.ne.s32.totalorder %s96, %s97
      %p109 = scmp.eq.s32.totalorder %s24, 1
      %p110 = por %p108, %p109
      %p112 = scmp.ne.s32.totalorder %s97, %s111
      %p113 = scmp.eq.s32.totalorder %s24, 0
      %p114 = por %p112, %p113
      %s116 = sadd.s32 %s115, 1
      %p119 = scmp.eq.s32.totalorder %s18, 1
      %p120 = scmp.ne.s32.totalorder %s115, %s117
      %p121 = scmp.eq.s32.totalorder %s18, 0
      %p122 = por %p120, %p121
      %p123 = scmp.ne.s32.totalorder %s115, %s117
      %p124 = scmp.eq.s32.totalorder %s23, 1
      %p125 = por %p123, %p124
      %p126 = scmp.ne.s32.totalorder %s117, %s118
      %p127 = scmp.eq.s32.totalorder %s23, 0
      %p128 = por %p126, %p127
      %p129 = scmp.ne.s32.totalorder %s117, %s118
      %p130 = scmp.eq.s32.totalorder %s24, 1
      %p131 = por %p129, %p130
      %p133 = scmp.ne.s32.totalorder %s118, %s132
      %p134 = scmp.eq.s32.totalorder %s24, 0
      %p135 = por %p133, %p134
      %s136 = ssub.s32 %s18, %s25
      %p137 = scmp.eq.s32.totalorder %s136, 0
      %s139 = sadd.s32 %s138, 1
      %s140 = scalar_select %p137, %s138, %s139
      %p143 = pneg %p137
      %p144 = scmp.eq.s32.totalorder %s18, 1
      %p145 = por %p143, %p144
      %p146 = scmp.ne.s32.totalorder %s138, %s141
      %p147 = scmp.eq.s32.totalorder %s18, 0
      %p148 = por %p146, %p147
      %p149 = scmp.ne.s32.totalorder %s138, %s141
      %p150 = scmp.eq.s32.totalorder %s23, 1
      %p151 = por %p149, %p150
      %p152 = scmp.ne.s32.totalorder %s141, %s142
      %p153 = scmp.eq.s32.totalorder %s23, 0
      %p154 = por %p152, %p153
      %p155 = scmp.ne.s32.totalorder %s141, %s142
      %p156 = scmp.eq.s32.totalorder %s24, 1
      %p157 = por %p155, %p156
      %p159 = scmp.ne.s32.totalorder %s142, %s158
      %p160 = scmp.eq.s32.totalorder %s24, 0
      %p161 = por %p159, %p160
      %p162 = scmp.le.s32.totalorder 1, %s18
      %p163 = scmp.lt.s32.totalorder %s18, 3
      %p164 = pnand %p162, %p163
      %p165 = pneg %p164
      // Predicated region
      $region9: #{tpu_custom_call.1} parent=5 // pred_check
        _
      $region10: #{tpu_custom_call.1} parent=5 // pred_check_branch
        %167 = sbr.rel (%p164) target = $region12
      $region11: #{tpu_custom_call.1} parent=5 // pred_region
        %s168 = ssub.s32 %s18, 1
        // Predicated region
        $region13: #{tpu_custom_call.1} parent=11 // pred_check
          %p169 = pneg %p65
        $region14: #{tpu_custom_call.1} parent=11 // pred_check_branch
          %171 = sbr.rel (%p169) target = $region16
        $region15: #{tpu_custom_call.1} parent=11 // pred_region
          %s173 = ssub.s32 768, 768
          %174 = vsyncadd [#allocation6], %s173
          %s175 = sshll.u32 [#allocation5], 4
          %s176 = int_to_ptr.vmem [resolvable:$true] %s175
          %181 = dma.hbm_to_vmem [thread:$0]  %s1, 768, %s176, [#allocation6], 64, 64, 4
        $region16: #{tpu_custom_call.1} parent=11 // pred_fallthru
          _
        // Predicated region
        $region17: #{tpu_custom_call.1} parent=11 // pred_check
          %p182 = pneg %p86
        $region18: #{tpu_custom_call.1} parent=11 // pred_check_branch
          %184 = sbr.rel (%p182) target = $region20
        $region19: #{tpu_custom_call.1} parent=11 // pred_region
          _
        $region20: #{tpu_custom_call.1} parent=11 // pred_fallthru
          _
        // Predicated region
        $region21: #{tpu_custom_call.1} parent=11 // pred_check
          %p185 = pneg %p107
        $region22: #{tpu_custom_call.1} parent=11 // pred_check_branch
          %187 = sbr.rel (%p185) target = $region24
        $region23: #{tpu_custom_call.1} parent=11 // pred_region
          %s189 = ssub.s32 2048, 2048
          %190 = vsyncadd [#allocation6], %s189
          %s191 = sshll.u32 [#allocation7], 4
          %s192 = int_to_ptr.vmem [resolvable:$true] %s191
          %197 = dma.hbm_to_vmem [thread:$0]  %s3, 2048, %s192, [#allocation6], 128, 128, 8
        $region24: #{tpu_custom_call.1} parent=11 // pred_fallthru
          _
        // Predicated region
        $region25: #{tpu_custom_call.1} parent=11 // pred_check
          %p198 = pneg %p128
        $region26: #{tpu_custom_call.1} parent=11 // pred_check_branch
          %200 = sbr.rel (%p198) target = $region28
        $region27: #{tpu_custom_call.1} parent=11 // pred_region
          _
        $region28: #{tpu_custom_call.1} parent=11 // pred_fallthru
          _
      $region12: #{tpu_custom_call.1} parent=5 // pred_fallthru
        _
      %p201 = scmp.lt.s32.totalorder %s18, 2
      // Predicated region
      $region29: #{tpu_custom_call.1} parent=5 // pred_check
        %p202 = pneg %p201
      $region30: #{tpu_custom_call.1} parent=5 // pred_check_branch
        %204 = sbr.rel (%p202) target = $region32
      $region31: #{tpu_custom_call.1} parent=5 // pred_region
        // Predicated region
        $region33: #{tpu_custom_call.1} parent=31 // pred_check
          %p205 = pneg %p38
        $region34: #{tpu_custom_call.1} parent=31 // pred_check_branch
          %207 = sbr.rel (%p205) target = $region36
        $region35: #{tpu_custom_call.1} parent=31 // pred_region
          %s208 = sand.u32 %s28, 1
          %s209 = scalar_lea.sflag [#allocation3], %s208
          %s210 = sand.u32 %s28, 1
          %s211 = smul.addr %s210, 192
          %s212 = scalar_lea.vmem [#allocation2], %s211
          %s213 = smul.u32 8, %s18
          %s215 = ssub.s32 3072, 3072
          %216 = vsyncadd %s209, %s215
          %s217 = smul.addr %s213, 3
          %s218 = smul.addr %s217, 128
          %s219 = scalar_lea.hbm %s0, %s218
          %s220 = sshll.u32 %s212, 4
          %s221 = int_to_ptr.vmem [resolvable:$true] %s220
          %226 = dma.hbm_to_vmem [thread:$0]  %s219, 3072, %s221, %s209, 128, 128, 8
        $region36: #{tpu_custom_call.1} parent=31 // pred_fallthru
          _
      $region32: #{tpu_custom_call.1} parent=5 // pred_fallthru
        _
      %p227 = scmp.le.s32.totalorder 1, %s18
      %p228 = scmp.lt.s32.totalorder %s18, 3
      %p229 = pnand %p227, %p228
      %p230 = pneg %p229
      // Predicated region
      $region37: #{tpu_custom_call.1} parent=5 // pred_check
        _
      $region38: #{tpu_custom_call.1} parent=5 // pred_check_branch
        %232 = sbr.rel (%p229) target = $region40
      $region39: #{tpu_custom_call.1} parent=5 // pred_region
        %s233 = ssub.s32 %s18, 1
        %s234 = sand.u32 %s31, 1
        %s235 = scalar_lea.sflag [#allocation3], %s234
        %s236 = sand.u32 %s31, 1
        %s237 = smul.addr %s236, 192
        %s238 = scalar_lea.vmem [#allocation2], %s237
        // Predicated region
        $region41: #{tpu_custom_call.1} parent=39 // pred_check
          %p239 = pneg %p44
        $region42: #{tpu_custom_call.1} parent=39 // pred_check_branch
          %241 = sbr.rel (%p239) target = $region44
        $region43: #{tpu_custom_call.1} parent=39 // pred_region
          %242 = dma.done %s235, 3072
        $region44: #{tpu_custom_call.1} parent=39 // pred_fallthru
          _
        // Predicated region
        $region45: #{tpu_custom_call.1} parent=39 // pred_check
          %p243 = pneg %p65
        $region46: #{tpu_custom_call.1} parent=39 // pred_check_branch
          %245 = sbr.rel (%p243) target = $region48
        $region47: #{tpu_custom_call.1} parent=39 // pred_region
          %246 = dma.done [#allocation6], 768
        $region48: #{tpu_custom_call.1} parent=39 // pred_fallthru
          _
        // Predicated region
        $region49: #{tpu_custom_call.1} parent=39 // pred_check
          %p247 = pneg %p107
        $region50: #{tpu_custom_call.1} parent=39 // pred_check_branch
          %249 = sbr.rel (%p247) target = $region52
        $region51: #{tpu_custom_call.1} parent=39 // pred_region
          %250 = dma.done [#allocation6], 2048
        $region52: #{tpu_custom_call.1} parent=39 // pred_fallthru
          _
        %s251 = sand.u32 %s31, 1
        %s252 = scalar_lea.sflag [#allocation3], %s251
        %s253 = sand.u32 %s31, 1
        %s254 = smul.addr %s253, 192
        %s255 = scalar_lea.vmem [#allocation2], %s254
        %p256 = pneg %p44
        %p257 = pneg %p41
        %p258 = pneg %p65
        %p259 = pneg %p62
        %p260 = pneg %p86
        %p261 = pneg %p83
        %p262 = pneg %p107
        %p263 = pneg %p104
        %p264 = pneg %p128
        %p265 = pneg %p125
        %p266 = pneg %p154
        %p267 = pneg %p151
        %s268 = sand.u32 %s141, 1
        %s269 = scalar_lea.sflag [#allocation4], %s268
        %s270 = sand.u32 %s141, 1
        %s271 = smul.addr %s270, 8
        %s272 = scalar_lea.vmem [#allocation8], %s271
        %s273 = smul.u32 8, %s23
        %v275 = vld [vmem:[%s238] sm:$0xff]
        %v276 = vld [vmem:[%s238 + $0x8] sm:$0xff]
        %v277 = vld [vmem:[%s238 + $0x18] sm:$0xff]
        %v278 = vld [vmem:[%s238 + $0x20] sm:$0xff]
        %v279 = vld [vmem:[%s238 + $0x30] sm:$0xff]
        %v280 = vld [vmem:[%s238 + $0x38] sm:$0xff]
        %v281 = vld [vmem:[%s238 + $0x48] sm:$0xff]
        %v282 = vld [vmem:[%s238 + $0x50] sm:$0xff]
        %v283 = vld [vmem:[%s238 + $0x60] sm:$0xff]
        %v284 = vld [vmem:[%s238 + $0x68] sm:$0xff]
        %v285 = vld [vmem:[%s238 + $0x78] sm:$0xff]
        %v286 = vld [vmem:[%s238 + $0x80] sm:$0xff]
        %v287 = vld [vmem:[%s238 + $0x90] sm:$0xff]
        %v288 = vld [vmem:[%s238 + $0x98] sm:$0xff]
        %v289 = vld [vmem:[%s238 + $0xa8] sm:$0xff]
        %v290 = vld [vmem:[%s238 + $0xb0] sm:$0xff]
        %v291 = vpack.c.bf16 %v276, %v275
        %v292 = vpack.c.bf16 %v278, %v277
        %v293 = vpack.c.bf16 %v280, %v279
        %v294 = vpack.c.bf16 %v282, %v281
        %v295 = vpack.c.bf16 %v284, %v283
        %v296 = vpack.c.bf16 %v286, %v285
        %v297 = vpack.c.bf16 %v288, %v287
        %v298 = vpack.c.bf16 %v290, %v289
        %v299 = vld [vmem:[#allocation5] sm:$0xf]
        %v300 = vld [vmem:[#allocation5 + $0x4] sm:$0xf]
        %v301 = vld [vmem:[#allocation5 + $0x8] sm:$0xf]
        %v302 = vld [vmem:[#allocation5 + $0xc] sm:$0xf]
        %v303 = vld [vmem:[%s238 + $0x1] sm:$0xff]
        %v304 = vld [vmem:[%s238 + $0x9] sm:$0xff]
        %v305 = vld [vmem:[%s238 + $0x19] sm:$0xff]
        %v306 = vld [vmem:[%s238 + $0x21] sm:$0xff]
        %v307 = vld [vmem:[%s238 + $0x31] sm:$0xff]
        %v308 = vld [vmem:[%s238 + $0x39] sm:$0xff]
        %v309 = vld [vmem:[%s238 + $0x49] sm:$0xff]
        %v310 = vld [vmem:[%s238 + $0x51] sm:$0xff]
        %v311 = vld [vmem:[%s238 + $0x61] sm:$0xff]
        %v312 = vld [vmem:[%s238 + $0x69] sm:$0xff]
        %v313 = vld [vmem:[%s238 + $0x79] sm:$0xff]
        %v314 = vld [vmem:[%s238 + $0x81] sm:$0xff]
        %v315 = vld [vmem:[%s238 + $0x91] sm:$0xff]
        %v316 = vld [vmem:[%s238 + $0x99] sm:$0xff]
        %v317 = vld [vmem:[%s238 + $0xa9] sm:$0xff]
        %v318 = vld [vmem:[%s238 + $0xb1] sm:$0xff]
        %v319 = vpack.c.bf16 %v304, %v303
        %v320 = vpack.c.bf16 %v306, %v305
        %v321 = vpack.c.bf16 %v308, %v307
        %v322 = vpack.c.bf16 %v310, %v309
        %v323 = vpack.c.bf16 %v312, %v311
        %v324 = vpack.c.bf16 %v314, %v313
        %v325 = vpack.c.bf16 %v316, %v315
        %v326 = vpack.c.bf16 %v318, %v317
        %s327 = scalar_lea.vmem [#allocation5], 16
        %v328 = vld [vmem:[%s327] sm:$0xf]
        %v329 = vld [vmem:[%s327 + $0x4] sm:$0xf]
        %v330 = vld [vmem:[%s327 + $0x8] sm:$0xf]
        %v331 = vld [vmem:[%s327 + $0xc] sm:$0xf]
        %v336 = vunpack.c.l.b16 %v328
        %v337 = vunpack.c.l.b16 %v329
        %v338 = vunpack.c.l.b16 %v330
        %v339 = vunpack.c.l.b16 %v331
        %v340 = vpack.c.b16 %v337, %v336
        %v341 = vpack.c.b16 %v339, %v338
        %vm344 = vcmask 261120
        %v346 = vsel %vm344, %v319, 0
        %v349 = vsel %vm344, %v320, 0
        %v352 = vsel %vm344, %v321, 0
        %v355 = vsel %vm344, %v322, 0
        %v358 = vsel %vm344, %v323, 0
        %v361 = vsel %vm344, %v324, 0
        %v364 = vsel %vm344, %v325, 0
        %v367 = vsel %vm344, %v326, 0
        %369 = vmatprep.subr.bf16.mxu0 0
        %370 = vmatpush1.bf16.msra.mxu0 0
        %371 = vmatprep.subr.bf16.mxu0 0
        %372 = vmatpush1.bf16.msra.mxu0 0
        %373 = vmatprep.subr.bf16.mxu0 0
        %374 = vmatpush1.bf16.msra.mxu0 0
        %375 = vmatprep.subr.bf16.mxu0 0
        %376 = vmatpush1.bf16.msra.mxu0 0
        %377 = vmatprep.subr.bf16.mxu0 0
        %378 = vmatpush1.bf16.msra.mxu0 0
        %379 = vmatprep.subr.bf16.mxu0 0
        %380 = vmatpush1.bf16.msra.mxu0 0
        %381 = vmatprep.subr.bf16.mxu0 0
        %382 = vmatpush1.bf16.msra.mxu0 %v341
        %383 = vmatprep.subr.bf16.mxu0 0
        %384 = vmatpush1.bf16.msra.mxu0 %v340
        %385 = vmatprep.subr.bf16.mxu0 0
        %386 = vmatpush2.bf16.msra.mxu0 0
        %387 = vmatprep.subr.bf16.mxu0 0
        %388 = vmatpush2.bf16.msra.mxu0 0
        %389 = vmatprep.subr.bf16.mxu0 0
        %390 = vmatpush2.bf16.msra.mxu0 0
        %391 = vmatprep.subr.bf16.mxu0 0
        %392 = vmatpush2.bf16.msra.mxu0 0
        %393 = vmatprep.subr.bf16.mxu0 0
        %394 = vmatpush2.bf16.msra.mxu0 0
        %395 = vmatprep.subr.bf16.mxu0 0
        %396 = vmatpush2.bf16.msra.mxu0 0
        %397 = vmatprep.subr.bf16.mxu0 0
        %398 = vmatpush2.bf16.msra.mxu0 0
        %399 = vmatprep.subr.bf16.mxu0 0
        %400 = vmatpush2.bf16.msra.mxu0 0
        %401 = vmatprep.mubr.bf16.mxu0 0
        %402 = vmatmul.mubr.bf16.gmra.mxu0 %v346
        %v403 = vpop.f32.mrf.mxu0
        %v404 = vadd.f32 0.0, %v403
        %v405 = vpop.f32.mrf.mxu0
        %v406 = vpop.f32.mrf.mxu0
        %v407 = vadd.f32 0.0, %v406
        %v408 = vpop.f32.mrf.mxu0
        %409 = vmatprep.mubr.bf16.mxu0 0
        %410 = vmatmul.mubr.bf16.gmra.mxu0 %v349
        %v411 = vpop.f32.mrf.mxu0
        %v412 = vadd.f32 0.0, %v411
        %v413 = vpop.f32.mrf.mxu0
        %v414 = vpop.f32.mrf.mxu0
        %v415 = vadd.f32 0.0, %v414
        %v416 = vpop.f32.mrf.mxu0
        %417 = vmatprep.mubr.bf16.mxu0 0
        %418 = vmatmul.mubr.bf16.gmra.mxu0 %v352
        %v419 = vpop.f32.mrf.mxu0
        %v420 = vadd.f32 0.0, %v419
        %v421 = vpop.f32.mrf.mxu0
        %v422 = vpop.f32.mrf.mxu0
        %v423 = vadd.f32 0.0, %v422
        %v424 = vpop.f32.mrf.mxu0
        %425 = vmatprep.mubr.bf16.mxu0 0
        %426 = vmatmul.mubr.bf16.gmra.mxu0 %v355
        %v427 = vpop.f32.mrf.mxu0
        %v428 = vadd.f32 0.0, %v427
        %v429 = vpop.f32.mrf.mxu0
        %v430 = vpop.f32.mrf.mxu0
        %v431 = vadd.f32 0.0, %v430
        %v432 = vpop.f32.mrf.mxu0
        %433 = vmatprep.mubr.bf16.mxu0 0
        %434 = vmatmul.mubr.bf16.gmra.mxu0 %v358
        %v435 = vpop.f32.mrf.mxu0
        %v436 = vadd.f32 0.0, %v435
        %v437 = vpop.f32.mrf.mxu0
        %v438 = vpop.f32.mrf.mxu0
        %v439 = vadd.f32 0.0, %v438
        %v440 = vpop.f32.mrf.mxu0
        %441 = vmatprep.mubr.bf16.mxu0 0
        %442 = vmatmul.mubr.bf16.gmra.mxu0 %v361
        %v443 = vpop.f32.mrf.mxu0
        %v444 = vadd.f32 0.0, %v443
        %v445 = vpop.f32.mrf.mxu0
        %v446 = vpop.f32.mrf.mxu0
        %v447 = vadd.f32 0.0, %v446
        %v448 = vpop.f32.mrf.mxu0
        %449 = vmatprep.mubr.bf16.mxu0 0
        %450 = vmatmul.mubr.bf16.gmra.mxu0 %v364
        %v451 = vpop.f32.mrf.mxu0
        %v452 = vadd.f32 0.0, %v451
        %v453 = vpop.f32.mrf.mxu0
        %v454 = vpop.f32.mrf.mxu0
        %v455 = vadd.f32 0.0, %v454
        %v456 = vpop.f32.mrf.mxu0
        %457 = vmatprep.mubr.bf16.mxu0 0
        %458 = vmatmul.mubr.bf16.gmra.mxu0 %v367
        %v459 = vpop.f32.mrf.mxu0
        %v460 = vadd.f32 0.0, %v459
        %v461 = vpop.f32.mrf.mxu0
        %v462 = vpop.f32.mrf.mxu0
        %v463 = vadd.f32 0.0, %v462
        %v464 = vpop.f32.mrf.mxu0
        %465 = vdwg.mxu0
        %v470 = vunpack.c.l.b16 %v299
        %v471 = vunpack.c.l.b16 %v300
        %v472 = vunpack.c.l.b16 %v301
        %v473 = vunpack.c.l.b16 %v302
        %v474 = vpack.c.b16 %v471, %v470
        %v475 = vpack.c.b16 %v473, %v472
        %v479 = vsel %vm344, %v291, 0
        %v482 = vsel %vm344, %v292, 0
        %v485 = vsel %vm344, %v293, 0
        %v488 = vsel %vm344, %v294, 0
        %v491 = vsel %vm344, %v295, 0
        %v494 = vsel %vm344, %v296, 0
        %v497 = vsel %vm344, %v297, 0
        %v500 = vsel %vm344, %v298, 0
        %502 = vmatprep.subr.bf16.mxu0 0
        %503 = vmatpush1.bf16.msra.mxu0 0
        %504 = vmatprep.subr.bf16.mxu0 0
        %505 = vmatpush1.bf16.msra.mxu0 0
        %506 = vmatprep.subr.bf16.mxu0 0
        %507 = vmatpush1.bf16.msra.mxu0 0
        %508 = vmatprep.subr.bf16.mxu0 0
        %509 = vmatpush1.bf16.msra.mxu0 0
        %510 = vmatprep.subr.bf16.mxu0 0
        %511 = vmatpush1.bf16.msra.mxu0 0
        %512 = vmatprep.subr.bf16.mxu0 0
        %513 = vmatpush1.bf16.msra.mxu0 0
        %514 = vmatprep.subr.bf16.mxu0 0
        %515 = vmatpush1.bf16.msra.mxu0 %v475
        %516 = vmatprep.subr.bf16.mxu0 0
        %517 = vmatpush1.bf16.msra.mxu0 %v474
        %518 = vmatprep.subr.bf16.mxu0 0
        %519 = vmatpush2.bf16.msra.mxu0 0
        %520 = vmatprep.subr.bf16.mxu0 0
        %521 = vmatpush2.bf16.msra.mxu0 0
        %522 = vmatprep.subr.bf16.mxu0 0
        %523 = vmatpush2.bf16.msra.mxu0 0
        %524 = vmatprep.subr.bf16.mxu0 0
        %525 = vmatpush2.bf16.msra.mxu0 0
        %526 = vmatprep.subr.bf16.mxu0 0
        %527 = vmatpush2.bf16.msra.mxu0 0
        %528 = vmatprep.subr.bf16.mxu0 0
        %529 = vmatpush2.bf16.msra.mxu0 0
        %530 = vmatprep.subr.bf16.mxu0 0
        %531 = vmatpush2.bf16.msra.mxu0 0
        %532 = vmatprep.subr.bf16.mxu0 0
        %533 = vmatpush2.bf16.msra.mxu0 0
        %534 = vmatprep.mubr.bf16.mxu0 0
        %535 = vmatmul.mubr.bf16.gmra.mxu0 %v479
        %v536 = vpop.f32.mrf.mxu0
        %v537 = vadd.f32 %v404, %v536
        %v538 = vpop.f32.mrf.mxu0
        %v539 = vpop.f32.mrf.mxu0
        %v540 = vadd.f32 %v407, %v539
        %v541 = vpop.f32.mrf.mxu0
        %542 = vmatprep.mubr.bf16.mxu0 0
        %543 = vmatmul.mubr.bf16.gmra.mxu0 %v482
        %v544 = vpop.f32.mrf.mxu0
        %v545 = vadd.f32 %v412, %v544
        %v546 = vpop.f32.mrf.mxu0
        %v547 = vpop.f32.mrf.mxu0
        %v548 = vadd.f32 %v415, %v547
        %v549 = vpop.f32.mrf.mxu0
        %550 = vmatprep.mubr.bf16.mxu0 0
        %551 = vmatmul.mubr.bf16.gmra.mxu0 %v485
        %v552 = vpop.f32.mrf.mxu0
        %v553 = vadd.f32 %v420, %v552
        %v554 = vpop.f32.mrf.mxu0
        %v555 = vpop.f32.mrf.mxu0
        %v556 = vadd.f32 %v423, %v555
        %v557 = vpop.f32.mrf.mxu0
        %558 = vmatprep.mubr.bf16.mxu0 0
        %559 = vmatmul.mubr.bf16.gmra.mxu0 %v488
        %v560 = vpop.f32.mrf.mxu0
        %v561 = vadd.f32 %v428, %v560
        %v562 = vpop.f32.mrf.mxu0
        %v563 = vpop.f32.mrf.mxu0
        %v564 = vadd.f32 %v431, %v563
        %v565 = vpop.f32.mrf.mxu0
        %566 = vmatprep.mubr.bf16.mxu0 0
        %567 = vmatmul.mubr.bf16.gmra.mxu0 %v491
        %v568 = vpop.f32.mrf.mxu0
        %v569 = vadd.f32 %v436, %v568
        %v570 = vpop.f32.mrf.mxu0
        %v571 = vpop.f32.mrf.mxu0
        %v572 = vadd.f32 %v439, %v571
        %v573 = vpop.f32.mrf.mxu0
        %574 = vmatprep.mubr.bf16.mxu0 0
        %575 = vmatmul.mubr.bf16.gmra.mxu0 %v494
        %v576 = vpop.f32.mrf.mxu0
        %v577 = vadd.f32 %v444, %v576
        %v578 = vpop.f32.mrf.mxu0
        %v579 = vpop.f32.mrf.mxu0
        %v580 = vadd.f32 %v447, %v579
        %v581 = vpop.f32.mrf.mxu0
        %582 = vmatprep.mubr.bf16.mxu0 0
        %583 = vmatmul.mubr.bf16.gmra.mxu0 %v497
        %v584 = vpop.f32.mrf.mxu0
        %v585 = vadd.f32 %v452, %v584
        %v586 = vpop.f32.mrf.mxu0
        %v587 = vpop.f32.mrf.mxu0
        %v588 = vadd.f32 %v455, %v587
        %v589 = vpop.f32.mrf.mxu0
        %590 = vmatprep.mubr.bf16.mxu0 0
        %591 = vmatmul.mubr.bf16.gmra.mxu0 %v500
        %v592 = vpop.f32.mrf.mxu0
        %v593 = vadd.f32 %v460, %v592
        %v594 = vpop.f32.mrf.mxu0
        %v595 = vpop.f32.mrf.mxu0
        %v596 = vadd.f32 %v463, %v595
        %v597 = vpop.f32.mrf.mxu0
        %598 = vdwg.mxu0
        %v599 = vld [vmem:[%s238 + $0x2] sm:$0xff]
        %v600 = vld [vmem:[%s238 + $0xa] sm:$0xff]
        %v601 = vld [vmem:[%s238 + $0x1a] sm:$0xff]
        %v602 = vld [vmem:[%s238 + $0x22] sm:$0xff]
        %v603 = vld [vmem:[%s238 + $0x32] sm:$0xff]
        %v604 = vld [vmem:[%s238 + $0x3a] sm:$0xff]
        %v605 = vld [vmem:[%s238 + $0x4a] sm:$0xff]
        %v606 = vld [vmem:[%s238 + $0x52] sm:$0xff]
        %v607 = vld [vmem:[%s238 + $0x62] sm:$0xff]
        %v608 = vld [vmem:[%s238 + $0x6a] sm:$0xff]
        %v609 = vld [vmem:[%s238 + $0x7a] sm:$0xff]
        %v610 = vld [vmem:[%s238 + $0x82] sm:$0xff]
        %v611 = vld [vmem:[%s238 + $0x92] sm:$0xff]
        %v612 = vld [vmem:[%s238 + $0x9a] sm:$0xff]
        %v613 = vld [vmem:[%s238 + $0xaa] sm:$0xff]
        %v614 = vld [vmem:[%s238 + $0xb2] sm:$0xff]
        %v615 = vpack.c.bf16 %v600, %v599
        %v616 = vpack.c.bf16 %v602, %v601
        %v617 = vpack.c.bf16 %v604, %v603
        %v618 = vpack.c.bf16 %v606, %v605
        %v619 = vpack.c.bf16 %v608, %v607
        %v620 = vpack.c.bf16 %v610, %v609
        %v621 = vpack.c.bf16 %v612, %v611
        %v622 = vpack.c.bf16 %v614, %v613
        %s623 = scalar_lea.vmem [#allocation5], 32
        %v624 = vld [vmem:[%s623] sm:$0xf]
        %v625 = vld [vmem:[%s623 + $0x4] sm:$0xf]
        %v626 = vld [vmem:[%s623 + $0x8] sm:$0xf]
        %v627 = vld [vmem:[%s623 + $0xc] sm:$0xf]
        %v632 = vunpack.c.l.b16 %v624
        %v633 = vunpack.c.l.b16 %v625
        %v634 = vunpack.c.l.b16 %v626
        %v635 = vunpack.c.l.b16 %v627
        %v636 = vpack.c.b16 %v633, %v632
        %v637 = vpack.c.b16 %v635, %v634
        %v641 = vsel %vm344, %v615, 0
        %v644 = vsel %vm344, %v616, 0
        %v647 = vsel %vm344, %v617, 0
        %v650 = vsel %vm344, %v618, 0
        %v653 = vsel %vm344, %v619, 0
        %v656 = vsel %vm344, %v620, 0
        %v659 = vsel %vm344, %v621, 0
        %v662 = vsel %vm344, %v622, 0
        %664 = vmatprep.subr.bf16.mxu0 0
        %665 = vmatpush1.bf16.msra.mxu0 0
        %666 = vmatprep.subr.bf16.mxu0 0
        %667 = vmatpush1.bf16.msra.mxu0 0
        %668 = vmatprep.subr.bf16.mxu0 0
        %669 = vmatpush1.bf16.msra.mxu0 0
        %670 = vmatprep.subr.bf16.mxu0 0
        %671 = vmatpush1.bf16.msra.mxu0 0
        %672 = vmatprep.subr.bf16.mxu0 0
        %673 = vmatpush1.bf16.msra.mxu0 0
        %674 = vmatprep.subr.bf16.mxu0 0
        %675 = vmatpush1.bf16.msra.mxu0 0
        %676 = vmatprep.subr.bf16.mxu0 0
        %677 = vmatpush1.bf16.msra.mxu0 %v637
        %678 = vmatprep.subr.bf16.mxu0 0
        %679 = vmatpush1.bf16.msra.mxu0 %v636
        %680 = vmatprep.subr.bf16.mxu0 0
        %681 = vmatpush2.bf16.msra.mxu0 0
        %682 = vmatprep.subr.bf16.mxu0 0
        %683 = vmatpush2.bf16.msra.mxu0 0
        %684 = vmatprep.subr.bf16.mxu0 0
        %685 = vmatpush2.bf16.msra.mxu0 0
        %686 = vmatprep.subr.bf16.mxu0 0
        %687 = vmatpush2.bf16.msra.mxu0 0
        %688 = vmatprep.subr.bf16.mxu0 0
        %689 = vmatpush2.bf16.msra.mxu0 0
        %690 = vmatprep.subr.bf16.mxu0 0
        %691 = vmatpush2.bf16.msra.mxu0 0
        %692 = vmatprep.subr.bf16.mxu0 0
        %693 = vmatpush2.bf16.msra.mxu0 0
        %694 = vmatprep.subr.bf16.mxu0 0
        %695 = vmatpush2.bf16.msra.mxu0 0
        %696 = vmatprep.mubr.bf16.mxu0 0
        %697 = vmatmul.mubr.bf16.gmra.mxu0 %v641
        %v698 = vpop.f32.mrf.mxu0
        %v699 = vadd.f32 0.0, %v698
        %v700 = vpop.f32.mrf.mxu0
        %v701 = vpop.f32.mrf.mxu0
        %v702 = vadd.f32 0.0, %v701
        %v703 = vpop.f32.mrf.mxu0
        %704 = vmatprep.mubr.bf16.mxu0 0
        %705 = vmatmul.mubr.bf16.gmra.mxu0 %v644
        %v706 = vpop.f32.mrf.mxu0
        %v707 = vadd.f32 0.0, %v706
        %v708 = vpop.f32.mrf.mxu0
        %v709 = vpop.f32.mrf.mxu0
        %v710 = vadd.f32 0.0, %v709
        %v711 = vpop.f32.mrf.mxu0
        %712 = vmatprep.mubr.bf16.mxu0 0
        %713 = vmatmul.mubr.bf16.gmra.mxu0 %v647
        %v714 = vpop.f32.mrf.mxu0
        %v715 = vadd.f32 0.0, %v714
        %v716 = vpop.f32.mrf.mxu0
        %v717 = vpop.f32.mrf.mxu0
        %v718 = vadd.f32 0.0, %v717
        %v719 = vpop.f32.mrf.mxu0
        %720 = vmatprep.mubr.bf16.mxu0 0
        %721 = vmatmul.mubr.bf16.gmra.mxu0 %v650
        %v722 = vpop.f32.mrf.mxu0
        %v723 = vadd.f32 0.0, %v722
        %v724 = vpop.f32.mrf.mxu0
        %v725 = vpop.f32.mrf.mxu0
        %v726 = vadd.f32 0.0, %v725
        %v727 = vpop.f32.mrf.mxu0
        %728 = vmatprep.mubr.bf16.mxu0 0
        %729 = vmatmul.mubr.bf16.gmra.mxu0 %v653
        %v730 = vpop.f32.mrf.mxu0
        %v731 = vadd.f32 0.0, %v730
        %v732 = vpop.f32.mrf.mxu0
        %v733 = vpop.f32.mrf.mxu0
        %v734 = vadd.f32 0.0, %v733
        %v735 = vpop.f32.mrf.mxu0
        %736 = vmatprep.mubr.bf16.mxu0 0
        %737 = vmatmul.mubr.bf16.gmra.mxu0 %v656
        %v738 = vpop.f32.mrf.mxu0
        %v739 = vadd.f32 0.0, %v738
        %v740 = vpop.f32.mrf.mxu0
        %v741 = vpop.f32.mrf.mxu0
        %v742 = vadd.f32 0.0, %v741
        %v743 = vpop.f32.mrf.mxu0
        %744 = vmatprep.mubr.bf16.mxu0 0
        %745 = vmatmul.mubr.bf16.gmra.mxu0 %v659
        %v746 = vpop.f32.mrf.mxu0
        %v747 = vadd.f32 0.0, %v746
        %v748 = vpop.f32.mrf.mxu0
        %v749 = vpop.f32.mrf.mxu0
        %v750 = vadd.f32 0.0, %v749
        %v751 = vpop.f32.mrf.mxu0
        %752 = vmatprep.mubr.bf16.mxu0 0
        %753 = vmatmul.mubr.bf16.gmra.mxu0 %v662
        %v754 = vpop.f32.mrf.mxu0
        %v755 = vadd.f32 0.0, %v754
        %v756 = vpop.f32.mrf.mxu0
        %v757 = vpop.f32.mrf.mxu0
        %v758 = vadd.f32 0.0, %v757
        %v759 = vpop.f32.mrf.mxu0
        %760 = vdwg.mxu0
        %v761 = vadd.f32 %v537, %v699
        %v762 = vadd.f32 %v540, %v702
        %v763 = vadd.f32 %v545, %v707
        %v764 = vadd.f32 %v548, %v710
        %v765 = vadd.f32 %v553, %v715
        %v766 = vadd.f32 %v556, %v718
        %v767 = vadd.f32 %v561, %v723
        %v768 = vadd.f32 %v564, %v726
        %v769 = vadd.f32 %v569, %v731
        %v770 = vadd.f32 %v572, %v734
        %v771 = vadd.f32 %v577, %v739
        %v772 = vadd.f32 %v580, %v742
        %v773 = vadd.f32 %v585, %v747
        %v774 = vadd.f32 %v588, %v750
        %v775 = vadd.f32 %v593, %v755
        %v776 = vadd.f32 %v596, %v758
        %v777 = vlaneseq
        %v778 = vshrl.u32 %v777, 7
        %v779 = vadd.s32 %v778, 8
        %v780 = vlaneseq
        %v781 = vand.u32 %v780, 127
        %vm782 = vcmp.ge.s32.totalorder %v781, 0
        %vm783 = vcmp.lt.s32.totalorder %v781, 64
        %vm784 = vmand %vm782, %vm783
        %v785 = vsel %vm784, 15, 0
        %vm786 = vcmp.ge.s32.totalorder %v781, 64
        %vm787 = vcmp.lt.s32.totalorder %v781, 128
        %vm788 = vmand %vm786, %vm787
        %v789 = vsel %vm788, 14, %v785
        %vm790 = vcmp.lt.s32.totalorder %v778, %v789
        %vm791 = vcmp.lt.s32.totalorder %v779, %v789
        %v792 = vsel %vm790, 1, 0
        %v793 = vsel %vm791, 1, 0
        %vm794 = vcmp.eq.s32.totalorder %v792, 1
        %vm795 = vcmp.eq.s32.totalorder %v793, 1
        %v796 = vsel %vm794, %v761, -inf
        %v797 = vsel %vm795, %v762, -inf
        %v798 = vsel %vm794, %v763, -inf
        %v799 = vsel %vm795, %v764, -inf
        %v800 = vsel %vm794, %v765, -inf
        %v801 = vsel %vm795, %v766, -inf
        %v802 = vsel %vm794, %v767, -inf
        %v803 = vsel %vm795, %v768, -inf
        %v804 = vsel %vm794, %v769, -inf
        %v805 = vsel %vm795, %v770, -inf
        %v806 = vsel %vm794, %v771, -inf
        %v807 = vsel %vm795, %v772, -inf
        %v808 = vsel %vm794, %v773, -inf
        %v809 = vsel %vm795, %v774, -inf
        %v810 = vsel %vm794, %v775, -inf
        %v811 = vsel %vm795, %v776, -inf
        %v812 = vmax.f32 %v796, %v797
        %v813 = vrot.slane %v812, 4
        %v814 = vmax.f32 %v812, %v813
        %v815 = vrot.slane %v814, 2
        %v816 = vmax.f32 %v814, %v815
        %v817 = vrot.slane %v816, 1
        %v818 = vmax.f32 %v816, %v817
        %v819 = vmax.f32 %v798, %v799
        %v820 = vrot.slane %v819, 4
        %v821 = vmax.f32 %v819, %v820
        %v822 = vrot.slane %v821, 2
        %v823 = vmax.f32 %v821, %v822
        %v824 = vrot.slane %v823, 1
        %v825 = vmax.f32 %v823, %v824
        %v826 = vmax.f32 %v800, %v801
        %v827 = vrot.slane %v826, 4
        %v828 = vmax.f32 %v826, %v827
        %v829 = vrot.slane %v828, 2
        %v830 = vmax.f32 %v828, %v829
        %v831 = vrot.slane %v830, 1
        %v832 = vmax.f32 %v830, %v831
        %v833 = vmax.f32 %v802, %v803
        %v834 = vrot.slane %v833, 4
        %v835 = vmax.f32 %v833, %v834
        %v836 = vrot.slane %v835, 2
        %v837 = vmax.f32 %v835, %v836
        %v838 = vrot.slane %v837, 1
        %v839 = vmax.f32 %v837, %v838
        %v840 = vmax.f32 %v804, %v805
        %v841 = vrot.slane %v840, 4
        %v842 = vmax.f32 %v840, %v841
        %v843 = vrot.slane %v842, 2
        %v844 = vmax.f32 %v842, %v843
        %v845 = vrot.slane %v844, 1
        %v846 = vmax.f32 %v844, %v845
        %v847 = vmax.f32 %v806, %v807
        %v848 = vrot.slane %v847, 4
        %v849 = vmax.f32 %v847, %v848
        %v850 = vrot.slane %v849, 2
        %v851 = vmax.f32 %v849, %v850
        %v852 = vrot.slane %v851, 1
        %v853 = vmax.f32 %v851, %v852
        %v854 = vmax.f32 %v808, %v809
        %v855 = vrot.slane %v854, 4
        %v856 = vmax.f32 %v854, %v855
        %v857 = vrot.slane %v856, 2
        %v858 = vmax.f32 %v856, %v857
        %v859 = vrot.slane %v858, 1
        %v860 = vmax.f32 %v858, %v859
        %v861 = vmax.f32 %v810, %v811
        %v862 = vrot.slane %v861, 4
        %v863 = vmax.f32 %v861, %v862
        %v864 = vrot.slane %v863, 2
        %v865 = vmax.f32 %v863, %v864
        %v866 = vrot.slane %v865, 1
        %v867 = vmax.f32 %v865, %v866
        %v868 = vld [vmem:[%s2] sm:$0x1]
        %v870 = vlaneseq
        %v871 = vshrl.u32 %v870, 7
        %v872 = vsub.s32 0, %v871
        %v873 = vrot.slane %v868, %v872
        %v875 = vadd.f32 %v818, %v873
        %v876 = vadd.f32 %v825, %v873
        %v877 = vadd.f32 %v832, %v873
        %v878 = vadd.f32 %v839, %v873
        %v879 = vadd.f32 %v846, %v873
        %v880 = vadd.f32 %v853, %v873
        %v881 = vadd.f32 %v860, %v873
        %v882 = vadd.f32 %v867, %v873
        %v883 = vmax.f32 %v875, 0.0
        %v884 = vmax.f32 %v876, 0.0
        %v885 = vmax.f32 %v877, 0.0
        %v886 = vmax.f32 %v878, 0.0
        %v887 = vmax.f32 %v879, 0.0
        %v888 = vmax.f32 %v880, 0.0
        %v889 = vmax.f32 %v881, 0.0
        %v890 = vmax.f32 %v882, 0.0
        %v891 = vpack.c.bf16 %v883, %v883
        %v892 = vpack.c.bf16 %v884, %v884
        %v893 = vpack.c.bf16 %v885, %v885
        %v894 = vpack.c.bf16 %v886, %v886
        %v895 = vpack.c.bf16 %v887, %v887
        %v896 = vpack.c.bf16 %v888, %v888
        %v897 = vpack.c.bf16 %v889, %v889
        %v898 = vpack.c.bf16 %v890, %v890
        %v899 = vld [vmem:[#allocation7] sm:$0xff]
        %v900 = vld [vmem:[#allocation7 + $0x8] sm:$0xff]
        %v901 = vld [vmem:[#allocation7 + $0x10] sm:$0xff]
        %v902 = vld [vmem:[#allocation7 + $0x18] sm:$0xff]
        %v903 = vld [vmem:[#allocation7 + $0x20] sm:$0xff]
        %v904 = vld [vmem:[#allocation7 + $0x28] sm:$0xff]
        %v905 = vld [vmem:[#allocation7 + $0x30] sm:$0xff]
        %v906 = vld [vmem:[#allocation7 + $0x38] sm:$0xff]
        %v907 = vld [vmem:[#allocation7 + $0x40] sm:$0xff]
        %v908 = vld [vmem:[#allocation7 + $0x48] sm:$0xff]
        %v909 = vld [vmem:[#allocation7 + $0x50] sm:$0xff]
        %v910 = vld [vmem:[#allocation7 + $0x58] sm:$0xff]
        %v911 = vld [vmem:[#allocation7 + $0x60] sm:$0xff]
        %v912 = vld [vmem:[#allocation7 + $0x68] sm:$0xff]
        %v913 = vld [vmem:[#allocation7 + $0x70] sm:$0xff]
        %v914 = vld [vmem:[#allocation7 + $0x78] sm:$0xff]
        %v915 = vld [vmem:[%s4] sm:$0x3]
        %v917 = vlaneseq
        %v918 = vshrl.u32 %v917, 7
        %v919 = vsub.s32 0, %v918
        %v920 = vrot.slane %v915, %v919
        %v921 = vlaneseq
        %v922 = vshrl.u32 %v921, 7
        %v923 = vsub.s32 1, %v922
        %v924 = vrot.slane %v915, %v923
        %v935 = vunpack.c.l.b16 %v891
        %v936 = vunpack.c.l.b16 %v892
        %v937 = vunpack.c.l.b16 %v893
        %v938 = vunpack.c.l.b16 %v894
        %v939 = vunpack.c.l.b16 %v895
        %v940 = vunpack.c.l.b16 %v896
        %v941 = vunpack.c.l.b16 %v897
        %v942 = vunpack.c.l.b16 %v898
        %v943 = vrot.slane %v936, 7
        %vm944 = vcmask 1041409
        %v945 = vsel %vm944, %v943, %v935
        %v946 = vrot.slane %v937, 6
        %vm947 = vcmask 1042434
        %v948 = vsel %vm947, %v946, %v945
        %v949 = vrot.slane %v938, 5
        %vm950 = vcmask 1043459
        %v951 = vsel %vm950, %v949, %v948
        %v952 = vrot.slane %v939, 4
        %vm953 = vcmask 1044484
        %v954 = vsel %vm953, %v952, %v951
        %v955 = vrot.slane %v940, 3
        %vm956 = vcmask 1045509
        %v957 = vsel %vm956, %v955, %v954
        %v958 = vrot.slane %v941, 2
        %vm959 = vcmask 1046534
        %v960 = vsel %vm959, %v958, %v957
        %v961 = vrot.slane %v942, 1
        %vm962 = vcmask 1047559
        %v963 = vsel %vm962, %v961, %v960
        %v964 = vpack.c.b16 %v963, %v963
        %v982 = vunpack.c.l.b16 %v899
        %v983 = vunpack.c.h.b16 %v899
        %v984 = vunpack.c.l.b16 %v900
        %v985 = vunpack.c.h.b16 %v900
        %v986 = vunpack.c.l.b16 %v901
        %v987 = vunpack.c.h.b16 %v901
        %v988 = vunpack.c.l.b16 %v902
        %v989 = vunpack.c.h.b16 %v902
        %v990 = vunpack.c.l.b16 %v903
        %v991 = vunpack.c.h.b16 %v903
        %v992 = vunpack.c.l.b16 %v904
        %v993 = vunpack.c.h.b16 %v904
        %v994 = vunpack.c.l.b16 %v905
        %v995 = vunpack.c.h.b16 %v905
        %v996 = vunpack.c.l.b16 %v906
        %v997 = vunpack.c.h.b16 %v906
        %v998 = vunpack.c.l.b16 %v907
        %v999 = vunpack.c.h.b16 %v907
        %v1000 = vunpack.c.l.b16 %v908
        %v1001 = vunpack.c.h.b16 %v908
        %v1002 = vunpack.c.l.b16 %v909
        %v1003 = vunpack.c.h.b16 %v909
        %v1004 = vunpack.c.l.b16 %v910
        %v1005 = vunpack.c.h.b16 %v910
        %v1006 = vunpack.c.l.b16 %v911
        %v1007 = vunpack.c.h.b16 %v911
        %v1008 = vunpack.c.l.b16 %v912
        %v1009 = vunpack.c.h.b16 %v912
        %v1010 = vunpack.c.l.b16 %v913
        %v1011 = vunpack.c.h.b16 %v913
        %v1012 = vunpack.c.l.b16 %v914
        %v1013 = vunpack.c.h.b16 %v914
        %v1014 = vpack.c.b16 %v984, %v982
        %v1015 = vpack.c.b16 %v985, %v983
        %v1016 = vpack.c.b16 %v988, %v986
        %v1017 = vpack.c.b16 %v989, %v987
        %v1018 = vpack.c.b16 %v992, %v990
        %v1019 = vpack.c.b16 %v993, %v991
        %v1020 = vpack.c.b16 %v996, %v994
        %v1021 = vpack.c.b16 %v997, %v995
        %v1022 = vpack.c.b16 %v1000, %v998
        %v1023 = vpack.c.b16 %v1001, %v999
        %v1024 = vpack.c.b16 %v1004, %v1002
        %v1025 = vpack.c.b16 %v1005, %v1003
        %v1026 = vpack.c.b16 %v1008, %v1006
        %v1027 = vpack.c.b16 %v1009, %v1007
        %v1028 = vpack.c.b16 %v1012, %v1010
        %v1029 = vpack.c.b16 %v1013, %v1011
        %1046 = vmatprep.subr.bf16.mxu0 %v1029
        %1047 = vmatpush1.bf16.msra.mxu0 %v1028
        %1048 = vmatprep.subr.bf16.mxu0 %v1027
        %1049 = vmatpush1.bf16.msra.mxu0 %v1026
        %1050 = vmatprep.subr.bf16.mxu0 %v1025
        %1051 = vmatpush1.bf16.msra.mxu0 %v1024
        %1052 = vmatprep.subr.bf16.mxu0 %v1023
        %1053 = vmatpush1.bf16.msra.mxu0 %v1022
        %1054 = vmatprep.subr.bf16.mxu0 %v1021
        %1055 = vmatpush1.bf16.msra.mxu0 %v1020
        %1056 = vmatprep.subr.bf16.mxu0 %v1019
        %1057 = vmatpush1.bf16.msra.mxu0 %v1018
        %1058 = vmatprep.subr.bf16.mxu0 %v1017
        %1059 = vmatpush1.bf16.msra.mxu0 %v1016
        %1060 = vmatprep.subr.bf16.mxu0 %v1015
        %1061 = vmatpush1.bf16.msra.mxu0 %v1014
        %1062 = vmatprep.subr.bf16.mxu0 0
        %1063 = vmatpush2.bf16.msra.mxu0 0
        %1064 = vmatprep.subr.bf16.mxu0 0
        %1065 = vmatpush2.bf16.msra.mxu0 0
        %1066 = vmatprep.subr.bf16.mxu0 0
        %1067 = vmatpush2.bf16.msra.mxu0 0
        %1068 = vmatprep.subr.bf16.mxu0 0
        %1069 = vmatpush2.bf16.msra.mxu0 0
        %1070 = vmatprep.subr.bf16.mxu0 0
        %1071 = vmatpush2.bf16.msra.mxu0 0
        %1072 = vmatprep.subr.bf16.mxu0 0
        %1073 = vmatpush2.bf16.msra.mxu0 0
        %1074 = vmatprep.subr.bf16.mxu0 0
        %1075 = vmatpush2.bf16.msra.mxu0 0
        %1076 = vmatprep.subr.bf16.mxu0 0
        %1077 = vmatpush2.bf16.msra.mxu0 0
        %1078 = vmatprep.mubr.bf16.mxu0 0
        %1079 = vmatmul.mubr.bf16.gmra.mxu0 %v964
        %v1080 = vpop.f32.mrf.mxu0
        %v1081 = vadd.f32 %v920, %v1080
        %v1082 = vpop.f32.mrf.mxu0
        %v1083 = vadd.f32 %v924, %v1082
        %v1084 = vpop.f32.mrf.mxu0
        %v1085 = vpop.f32.mrf.mxu0
        %1086 = vdwg.mxu0
        %v1087 = vmax.f32 %v1081, 0.0
        %v1088 = vxor.u32 %v1083, 2147483648
        %v1089 = vmul.f32 %v1088, 1.442695
        %v1090 = vpow.pop %v1089
        %v1091 = vadd.f32 %v1090, 1.0
        %v1092 = vrcp.pop %v1091
        %v1093 = vmul.f32 1.0, %v1092
        %v1102 = vrot.slane %v884, 7
        %v1103 = vsel %vm944, %v1102, %v883
        %v1104 = vrot.slane %v885, 6
        %v1105 = vsel %vm947, %v1104, %v1103
        %v1106 = vrot.slane %v886, 5
        %v1107 = vsel %vm950, %v1106, %v1105
        %v1108 = vrot.slane %v887, 4
        %v1109 = vsel %vm953, %v1108, %v1107
        %v1110 = vrot.slane %v888, 3
        %v1111 = vsel %vm956, %v1110, %v1109
        %v1112 = vrot.slane %v889, 2
        %v1113 = vsel %vm959, %v1112, %v1111
        %v1114 = vrot.slane %v890, 1
        %v1115 = vsel %vm962, %v1114, %v1113
        %v1117 = vmul.f32 %v1093, %v1115
        %v1118 = vsub.f32 1.0, %v1093
        %v1119 = vmul.f32 %v1118, %v1087
        %v1120 = vadd.f32 %v1117, %v1119
        %1121 = vst [vmem:[%s272] sm:$0xff] %v1120
        %s1122 = sand.u32 %s141, 1
        %s1123 = scalar_lea.sflag [#allocation4], %s1122
        %s1124 = sand.u32 %s141, 1
        %s1125 = smul.addr %s1124, 8
        %s1126 = scalar_lea.vmem [#allocation8], %s1125
        // Predicated region
        $region53: #{tpu_custom_call.1} parent=39 // pred_check
          %p1127 = pneg %p151
        $region54: #{tpu_custom_call.1} parent=39 // pred_check_branch
          %1129 = sbr.rel (%p1127) target = $region56
        $region55: #{tpu_custom_call.1} parent=39 // pred_region
          %s1131 = ssub.s32 128, 128
          %1132 = vsyncadd %s1123, %s1131
          %s1133 = smul.addr %s23, 128
          %s1134 = scalar_lea.hbm %s5, %s1133
          %s1136 = sshll.u32 %s1126, 4
          %s1137 = int_to_ptr.vmem [resolvable:$true] %s1136
          %1139 = dma.vmem_to_hbm [thread:$0]  %s1137, 128, %s1134, %s1123
        $region56: #{tpu_custom_call.1} parent=39 // pred_fallthru
          _
      $region40: #{tpu_custom_call.1} parent=5 // pred_fallthru
        _
      %p1140 = scmp.le.s32.totalorder 2, %s18
      // Predicated region
      $region57: #{tpu_custom_call.1} parent=5 // pred_check
        %p1141 = pneg %p1140
      $region58: #{tpu_custom_call.1} parent=5 // pred_check_branch
        %1143 = sbr.rel (%p1141) target = $region60
      $region59: #{tpu_custom_call.1} parent=5 // pred_region
        %s1144 = ssub.s32 %s18, 2
        // Predicated region
        $region61: #{tpu_custom_call.1} parent=59 // pred_check
          %p1145 = pneg %p157
        $region62: #{tpu_custom_call.1} parent=59 // pred_check_branch
          %1147 = sbr.rel (%p1145) target = $region64
        $region63: #{tpu_custom_call.1} parent=59 // pred_region
          %s1148 = sand.u32 %s142, 1
          %s1149 = scalar_lea.sflag [#allocation4], %s1148
          %s1150 = sand.u32 %s142, 1
          %s1151 = smul.addr %s1150, 8
          %s1152 = scalar_lea.vmem [#allocation8], %s1151
          %1153 = dma.done %s1149, 128
        $region64: #{tpu_custom_call.1} parent=59 // pred_fallthru
          _
      $region60: #{tpu_custom_call.1} parent=5 // pred_fallthru
        _
    $region6: #{tpu_custom_call.1} parent=1 // loop_footer
      %s22 = sadd.s32 1, %s18
    $region7: #{tpu_custom_call.1} parent=1 // loop_footer_branch
      %17 = sbr.rel target = $region3
    $region8: #{tpu_custom_call.1} parent=1 // loop_exit
      _
    %1154 = vsyncpa [#allocation3], 1
    %s1155 = scalar_lea.sflag [#allocation3], 1
    %1156 = vsyncpa %s1155, 1
    %1157 = vsyncpa [#allocation6], 1
    %1158 = vsyncpa [#allocation4], 1
    %s1159 = scalar_lea.sflag [#allocation4], 1
    %1160 = vsyncpa %s1159, 1

</llo_original>
